<compile_context>
chip_gen: v6e
topology: v6e:2x2x1
jax: 0.10.0
libtpu: 0.0.40
codegen_flags: <defaults>
</compile_context>

<pallas_src>
import jax
import jax.numpy as jnp
from jax import lax
from jax.experimental import pallas as pl
from jax.experimental.pallas import tpu as pltpu


def _round_up(v, m):
    return ((v + m - 1) // m) * m


def _patch_embed_kernel(p_ref, w_ref, b_ref, o_ref):
    """p_ref: (tm, K), w_ref: (K, tn), b_ref: (1, tn), o_ref: (tm, tn)."""
    acc = jnp.dot(p_ref[...], w_ref[...], preferred_element_type=jnp.float32)
    acc = acc + b_ref[...].astype(jnp.float32)
    o_ref[...] = acc.astype(o_ref.dtype)


def audio_patch_embed_pallas(x, weight, bias, patch_size, *, tile_m=128, tile_n=128):
    """x: (B, Cin, H, W); weight: (E, Cin, ph, pw); bias: (E,) -> (B, num_patches, E)."""
    B, Cin, H, W = x.shape
    ph, pw = patch_size
    E = weight.shape[0]
    Hp, Wp = H // ph, W // pw
    Np = Hp * Wp
    K = Cin * ph * pw
    M = B * Np

    # ---- im2col: layout plumbing only, no compute (stays outside the kernel) ----
    patches = x.reshape(B, Cin, Hp, ph, Wp, pw)
    patches = jnp.transpose(patches, (0, 2, 4, 1, 3, 5)).reshape(M, K)   # (M, K)
    w_flat = weight.reshape(E, K).T                                      # (K, E)
    b_row = bias.reshape(1, E)                                           # (1, E)

    # ---- tiling: lane-dense output (tn multiple of 128), big row blocks ----
    tm = tile_m if M >= tile_m else _round_up(M, 8)
    tn = tile_n if E >= tile_n else _round_up(E, 128)
    M_pad = _round_up(M, tm)
    N_pad = _round_up(E, tn)
    if M_pad != M:
        patches = jnp.pad(patches, ((0, M_pad - M), (0, 0)))
    if N_pad != E:
        w_flat = jnp.pad(w_flat, ((0, 0), (0, N_pad - E)))
        b_row = jnp.pad(b_row, ((0, 0), (0, N_pad - E)))

    grid = (M_pad // tm, N_pad // tn)

    out = pl.pallas_call(
        _patch_embed_kernel,
        out_shape=jax.ShapeDtypeStruct((M_pad, N_pad), x.dtype),
        grid_spec=pltpu.PrefetchScalarGridSpec(
            num_scalar_prefetch=0,
            grid=grid,
            in_specs=[
                pl.BlockSpec((tm, K), lambda i, j: (i, 0)),   # patch rows
                pl.BlockSpec((K, tn), lambda i, j: (0, j)),   # projection weight
                pl.BlockSpec((1, tn), lambda i, j: (0, j)),   # bias
            ],
            out_specs=pl.BlockSpec((tm, tn), lambda i, j: (i, j)),
        ),
        compiler_params=pltpu.CompilerParams(
            dimension_semantics=("parallel", "parallel")),
    )(patches, w_flat, b_row)

    return out[:M, :E].reshape(B, Np, E)


def audio_patch_embed_reference(x, weight, bias, patch_size):
    """Plain-JAX mirror of the PyTorch forward: conv -> flatten(2) -> transpose(1,2)."""
    y = lax.conv_general_dilated(
        x, weight, window_strides=patch_size, padding="VALID",
        dimension_numbers=("NCHW", "OIHW", "NCHW"),
        precision=lax.Precision.HIGHEST)
    y = y + bias[None, :, None, None]
    B, E, Hp, Wp = y.shape
    return jnp.transpose(y.reshape(B, E, Hp * Wp), (0, 2, 1))


if __name__ == "__main__":
    # Small shapes consistent with the module:
    # patch_size=8, in_chans=2, audio_size=64, frequency_size=32, embed_dim=128
    B, Cin = 2, 2
    H, W = 64, 32            # (audio_size, frequency_size)
    ph, pw = 8, 8
    E = 128

    key = jax.random.PRNGKey(0)
    kx, kw, kb = jax.random.split(key, 3)
    x = jax.random.normal(kx, (B, Cin, H, W), dtype=jnp.float32)
    weight = jax.random.normal(kw, (E, Cin, ph, pw), dtype=jnp.float32) * 0.05
    bias = jax.random.normal(kb, (E,), dtype=jnp.float32) * 0.01

    out = audio_patch_embed_pallas(x, weight, bias, (ph, pw))
    out = jax.block_until_ready(out)

    ref = audio_patch_embed_reference(x, weight, bias, (ph, pw))
    Np = (H // ph) * (W // pw)
    assert out.shape == (B, Np, E), out.shape
    assert jnp.allclose(out, ref, atol=1e-3, rtol=1e-3), (
        "max abs diff = %f" % float(jnp.max(jnp.abs(out - ref))))

    print("KERNEL_OK")
</pallas_src>

<mosaic_0001>
module attributes {stable_mosaic.version = 11 : i64} {
  func.func @_patch_embed_kernel(%arg0: i32, %arg1: i32, %arg2: memref<64x128xf32, #tpu.memory_space<vmem>>, %arg3: memref<128x128xf32, #tpu.memory_space<vmem>>, %arg4: memref<1x128xf32, #tpu.memory_space<vmem>>, %arg5: memref<64x128xf32, #tpu.memory_space<vmem>>) attributes {dimension_semantics = [#tpu.dimension_semantics<parallel>, #tpu.dimension_semantics<parallel>], iteration_bounds = array<i64: 1, 1>, scalar_prefetch = 0 : i64, scratch_operands = 0 : i64, tpu.core_type = #tpu.core_type<tc>, window_params = [{transform_indices = @transform_0, window_bounds = array<i64: 64, 128>}, {transform_indices = @transform_1, window_bounds = array<i64: 128, 128>}, {transform_indices = @transform_2, window_bounds = array<i64: 1, 128>}, {transform_indices = @transform_3, window_bounds = array<i64: 64, 128>}]} {
    %c0 = arith.constant 0 : index
    %c0_0 = arith.constant 0 : index
    %0 = vector.load %arg2[%c0, %c0_0] : memref<64x128xf32, #tpu.memory_space<vmem>>, vector<64x128xf32>
    %c0_1 = arith.constant 0 : index
    %c0_2 = arith.constant 0 : index
    %1 = vector.load %arg3[%c0_1, %c0_2] : memref<128x128xf32, #tpu.memory_space<vmem>>, vector<128x128xf32>
    %cst = arith.constant dense<0.000000e+00> : vector<64x128xf32>
    %2 = tpu.matmul %0, %1, %cst {dimension_numbers = #tpu.dot_dimension_numbers<[1], [0], [0], [1], [0, 0, 1, 1], [], []>} : vector<64x128xf32>, vector<128x128xf32>, vector<64x128xf32> -> vector<64x128xf32>
    %c0_3 = arith.constant 0 : index
    %c0_4 = arith.constant 0 : index
    %3 = vector.load %arg4[%c0_3, %c0_4] : memref<1x128xf32, #tpu.memory_space<vmem>>, vector<1x128xf32>
    %4 = vector.broadcast %3 : vector<1x128xf32> to vector<64x128xf32>
    %5 = arith.addf %2, %4 : vector<64x128xf32>
    %c0_5 = arith.constant 0 : index
    %c0_6 = arith.constant 0 : index
    %6 = vector.load %arg5[%c0_5, %c0_6] : memref<64x128xf32, #tpu.memory_space<vmem>>, vector<64x128xf32>
    tpu.vector_store %arg5[%c0_5, %c0_6], %5 {strides = array<i32>} : memref<64x128xf32, #tpu.memory_space<vmem>>, vector<64x128xf32>,
    return
  }
  func.func @transform_0(%arg0: i32, %arg1: i32) -> (i32, i32) {
    %c0_i32 = arith.constant 0 : i32
    %c0_i32_0 = arith.constant 0 : i32
    return %arg0, %c0_i32 : i32, i32
  }
  func.func @transform_1(%arg0: i32, %arg1: i32) -> (i32, i32) {
    %c0_i32 = arith.constant 0 : i32
    %c0_i32_0 = arith.constant 0 : i32
    return %c0_i32, %arg1 : i32, i32
  }
  func.func @transform_2(%arg0: i32, %arg1: i32) -> (i32, i32) {
    %c0_i32 = arith.constant 0 : i32
    %c0_i32_0 = arith.constant 0 : i32
    return %c0_i32, %arg1 : i32, i32
  }
  func.func @transform_3(%arg0: i32, %arg1: i32) -> (i32, i32) {
    %c0_i32 = arith.constant 0 : i32
    return %arg0, %arg1 : i32, i32
  }
}

</mosaic_0001>

<llo_original>
// kernel: tpu_custom_call.1
$region0: #{tpu_custom_call.1}
  #allocation0 [shape = 'u32[]', space=smem, size = 0x4, offset = 0x4, fixed_abs, tag = 'smem constant byte address 0x4 - core index']
  #allocation1 [shape = 'u32[144,128]{1,0:T(1,128)}', space=vmem, size = 0x12000, scoped, tag = 'internal scratch']
  %s0 = inlined_call_operand.hbm [shape: f32[64,128], index: 0, kind: input, shape index: {}]
  %s1 = inlined_call_operand.hbm [shape: f32[128,128], index: 1, kind: input, shape index: {}]
  %s2 = inlined_call_operand.vmem [shape: f32[1,128], index: 2, kind: input, shape index: {}]
  %s3 = inlined_call_operand.hbm [shape: f32[64,128], index: 3, kind: output, shape index: {}]
  %s4 = sld [smem:[#allocation0]]
  $region30: #{tpu_custom_call.1} parent=0
    _
  %s6 = ssub.s32 1, %s4
  %s7 = scalar_select 0, %s6, %s4
  $region1: #{tpu_custom_call.1} parent=0
    #allocation2 [shape = 'u8[32768]{0}', space=vmem, size = 0x8000, scoped, tag = 'input window, operand 0, single buffered']
    #allocation3 [shape = 's32[1]{0}', space=sflag, size = 0x4, scoped, tag = 'scoped memory for tpu_custom_call.1']
    #allocation4 [shape = 's32[1]{0}', space=sflag, size = 0x4, scoped, tag = 'scoped memory for tpu_custom_call.1']
    #allocation5 [shape = 'u8[65536]{0}', space=vmem, size = 0x10000, scoped, tag = 'input window, operand 1, single buffered']
    #allocation6 [shape = 's32[1]{0}', space=sflag, size = 0x4, scoped, tag = 'scoped memory for tpu_custom_call.1']
    #allocation7 [shape = 'u8[32768]{0}', space=vmem, size = 0x8000, scoped, tag = 'output window, operand 0, single buffered']
    %8 = vsyncpa [#allocation3], 0
    %9 = vsyncpa [#allocation6], 0
    %10 = vsyncpa [#allocation4], 0
    // Predicated region
    $region2: #{tpu_custom_call.1} parent=1 // pred_check
      _
    $region3: #{tpu_custom_call.1} parent=1 // pred_check_branch
      %12 = sbr.rel (0) target = $region5
    $region4: #{tpu_custom_call.1} parent=1 // pred_region
      %s14 = ssub.s32 1024, 1024
      %15 = vsyncadd [#allocation3], %s14
      %s16 = sshll.u32 [#allocation2], 4
      %s17 = int_to_ptr.vmem [resolvable:$true] %s16
      %22 = dma.hbm_to_vmem [thread:$0]  %s0, 1024, %s17, [#allocation3], 128, 128, 8
    $region5: #{tpu_custom_call.1} parent=1 // pred_fallthru
      _
    // Predicated region
    $region6: #{tpu_custom_call.1} parent=1 // pred_check
      _
    $region7: #{tpu_custom_call.1} parent=1 // pred_check_branch
      %24 = sbr.rel (0) target = $region9
    $region8: #{tpu_custom_call.1} parent=1 // pred_region
      %s26 = ssub.s32 2048, 2048
      %27 = vsyncadd [#allocation6], %s26
      %s28 = sshll.u32 [#allocation5], 4
      %s29 = int_to_ptr.vmem [resolvable:$true] %s28
      %34 = dma.hbm_to_vmem [thread:$0]  %s1, 2048, %s29, [#allocation6], 128, 128, 8
    $region9: #{tpu_custom_call.1} parent=1 // pred_fallthru
      _
    // Predicated region
    $region10: #{tpu_custom_call.1} parent=1 // pred_check
      _
    $region11: #{tpu_custom_call.1} parent=1 // pred_check_branch
      %36 = sbr.rel (0) target = $region13
    $region12: #{tpu_custom_call.1} parent=1 // pred_region
      _
    $region13: #{tpu_custom_call.1} parent=1 // pred_fallthru
      _
    // Predicated region
    $region14: #{tpu_custom_call.1} parent=1 // pred_check
      _
    $region15: #{tpu_custom_call.1} parent=1 // pred_check_branch
      %38 = sbr.rel (0) target = $region17
    $region16: #{tpu_custom_call.1} parent=1 // pred_region
      %39 = dma.done [#allocation3], 1024
    $region17: #{tpu_custom_call.1} parent=1 // pred_fallthru
      _
    // Predicated region
    $region18: #{tpu_custom_call.1} parent=1 // pred_check
      _
    $region19: #{tpu_custom_call.1} parent=1 // pred_check_branch
      %41 = sbr.rel (0) target = $region21
    $region20: #{tpu_custom_call.1} parent=1 // pred_region
      %42 = dma.done [#allocation6], 2048
    $region21: #{tpu_custom_call.1} parent=1 // pred_fallthru
      _
    %v43 = vld [vmem:[#allocation2] sm:$0xff]
    %v44 = vld [vmem:[#allocation2 + $0x8] sm:$0xff]
    %v45 = vld [vmem:[#allocation2 + $0x10] sm:$0xff]
    %v46 = vld [vmem:[#allocation2 + $0x18] sm:$0xff]
    %v47 = vld [vmem:[#allocation2 + $0x20] sm:$0xff]
    %v48 = vld [vmem:[#allocation2 + $0x28] sm:$0xff]
    %v49 = vld [vmem:[#allocation2 + $0x30] sm:$0xff]
    %v50 = vld [vmem:[#allocation2 + $0x38] sm:$0xff]
    %v51 = vld [vmem:[#allocation5] sm:$0xff]
    %v52 = vld [vmem:[#allocation5 + $0x8] sm:$0xff]
    %v53 = vld [vmem:[#allocation5 + $0x10] sm:$0xff]
    %v54 = vld [vmem:[#allocation5 + $0x18] sm:$0xff]
    %v55 = vld [vmem:[#allocation5 + $0x20] sm:$0xff]
    %v56 = vld [vmem:[#allocation5 + $0x28] sm:$0xff]
    %v57 = vld [vmem:[#allocation5 + $0x30] sm:$0xff]
    %v58 = vld [vmem:[#allocation5 + $0x38] sm:$0xff]
    %v59 = vld [vmem:[#allocation5 + $0x40] sm:$0xff]
    %v60 = vld [vmem:[#allocation5 + $0x48] sm:$0xff]
    %v61 = vld [vmem:[#allocation5 + $0x50] sm:$0xff]
    %v62 = vld [vmem:[#allocation5 + $0x58] sm:$0xff]
    %v63 = vld [vmem:[#allocation5 + $0x60] sm:$0xff]
    %v64 = vld [vmem:[#allocation5 + $0x68] sm:$0xff]
    %v65 = vld [vmem:[#allocation5 + $0x70] sm:$0xff]
    %v66 = vld [vmem:[#allocation5 + $0x78] sm:$0xff]
    %v67 = vld [vmem:[%s2] sm:$0x1]
    %v69 = vlaneseq
    %v70 = vshrl.u32 %v69, 7
    %v71 = vsub.s32 0, %v70
    %v72 = vrot.slane %v67, %v71
    %74 = vmatprep.subr.mxu0 0.0
    %75 = vmatpush1.msra.mxu0 %v66
    %76 = vmatprep.subr.mxu0 0.0
    %77 = vmatpush1.msra.mxu0 %v65
    %78 = vmatprep.subr.mxu0 0.0
    %79 = vmatpush1.msra.mxu0 %v64
    %80 = vmatprep.subr.mxu0 0.0
    %81 = vmatpush1.msra.mxu0 %v63
    %82 = vmatprep.subr.mxu0 0.0
    %83 = vmatpush1.msra.mxu0 %v62
    %84 = vmatprep.subr.mxu0 0.0
    %85 = vmatpush1.msra.mxu0 %v61
    %86 = vmatprep.subr.mxu0 0.0
    %87 = vmatpush1.msra.mxu0 %v60
    %88 = vmatprep.subr.mxu0 0.0
    %89 = vmatpush1.msra.mxu0 %v59
    %90 = vmatprep.subr.mxu0 0.0
    %91 = vmatpush1.msra.mxu0 %v58
    %92 = vmatprep.subr.mxu0 0.0
    %93 = vmatpush1.msra.mxu0 %v57
    %94 = vmatprep.subr.mxu0 0.0
    %95 = vmatpush1.msra.mxu0 %v56
    %96 = vmatprep.subr.mxu0 0.0
    %97 = vmatpush1.msra.mxu0 %v55
    %98 = vmatprep.subr.mxu0 0.0
    %99 = vmatpush1.msra.mxu0 %v54
    %100 = vmatprep.subr.mxu0 0.0
    %101 = vmatpush1.msra.mxu0 %v53
    %102 = vmatprep.subr.mxu0 0.0
    %103 = vmatpush1.msra.mxu0 %v52
    %104 = vmatprep.subr.mxu0 0.0
    %105 = vmatpush1.msra.mxu0 %v51
    %106 = vmatprep.subr.mxu0 0.0
    %107 = vmatpush2.msra.mxu0 0.0
    %108 = vmatprep.subr.mxu0 0.0
    %109 = vmatpush2.msra.mxu0 0.0
    %110 = vmatprep.subr.mxu0 0.0
    %111 = vmatpush2.msra.mxu0 0.0
    %112 = vmatprep.subr.mxu0 0.0
    %113 = vmatpush2.msra.mxu0 0.0
    %114 = vmatprep.subr.mxu0 0.0
    %115 = vmatpush2.msra.mxu0 0.0
    %116 = vmatprep.subr.mxu0 0.0
    %117 = vmatpush2.msra.mxu0 0.0
    %118 = vmatprep.subr.mxu0 0.0
    %119 = vmatpush2.msra.mxu0 0.0
    %120 = vmatprep.subr.mxu0 0.0
    %121 = vmatpush2.msra.mxu0 0.0
    %122 = vmatprep.subr.mxu0 0.0
    %123 = vmatpush2.msra.mxu0 0.0
    %124 = vmatprep.subr.mxu0 0.0
    %125 = vmatpush2.msra.mxu0 0.0
    %126 = vmatprep.subr.mxu0 0.0
    %127 = vmatpush2.msra.mxu0 0.0
    %128 = vmatprep.subr.mxu0 0.0
    %129 = vmatpush2.msra.mxu0 0.0
    %130 = vmatprep.subr.mxu0 0.0
    %131 = vmatpush2.msra.mxu0 0.0
    %132 = vmatprep.subr.mxu0 0.0
    %133 = vmatpush2.msra.mxu0 0.0
    %134 = vmatprep.subr.mxu0 0.0
    %135 = vmatpush2.msra.mxu0 0.0
    %136 = vmatprep.subr.mxu0 0.0
    %137 = vmatpush2.msra.mxu0 0.0
    %138 = vmatprep.mubr.f32.mxu0 0.0
    %139 = vmatmul.mubr.f32.gmra.mxu0 %v43
    %v140 = vpop.f32.mrf.mxu0
    %v141 = vadd.f32 %v72, %v140
    %v142 = vpop.f32.mrf.mxu0
    %143 = vmatprep.mubr.f32.mxu0 0.0
    %144 = vmatmul.mubr.f32.gmra.mxu0 %v44
    %v145 = vpop.f32.mrf.mxu0
    %v146 = vadd.f32 %v72, %v145
    %v147 = vpop.f32.mrf.mxu0
    %148 = vmatprep.mubr.f32.mxu0 0.0
    %149 = vmatmul.mubr.f32.gmra.mxu0 %v45
    %v150 = vpop.f32.mrf.mxu0
    %v151 = vadd.f32 %v72, %v150
    %v152 = vpop.f32.mrf.mxu0
    %153 = vmatprep.mubr.f32.mxu0 0.0
    %154 = vmatmul.mubr.f32.gmra.mxu0 %v46
    %v155 = vpop.f32.mrf.mxu0
    %v156 = vadd.f32 %v72, %v155
    %v157 = vpop.f32.mrf.mxu0
    %158 = vmatprep.mubr.f32.mxu0 0.0
    %159 = vmatmul.mubr.f32.gmra.mxu0 %v47
    %v160 = vpop.f32.mrf.mxu0
    %v161 = vadd.f32 %v72, %v160
    %v162 = vpop.f32.mrf.mxu0
    %163 = vmatprep.mubr.f32.mxu0 0.0
    %164 = vmatmul.mubr.f32.gmra.mxu0 %v48
    %v165 = vpop.f32.mrf.mxu0
    %v166 = vadd.f32 %v72, %v165
    %v167 = vpop.f32.mrf.mxu0
    %168 = vmatprep.mubr.f32.mxu0 0.0
    %169 = vmatmul.mubr.f32.gmra.mxu0 %v49
    %v170 = vpop.f32.mrf.mxu0
    %v171 = vadd.f32 %v72, %v170
    %v172 = vpop.f32.mrf.mxu0
    %173 = vmatprep.mubr.f32.mxu0 0.0
    %174 = vmatmul.mubr.f32.gmra.mxu0 %v50
    %v175 = vpop.f32.mrf.mxu0
    %v176 = vadd.f32 %v72, %v175
    %v177 = vpop.f32.mrf.mxu0
    %178 = vdwg.mxu0
    %179 = vst [vmem:[#allocation7] sm:$0xff] %v141
    %180 = vst [vmem:[#allocation7 + $0x8] sm:$0xff] %v146
    %181 = vst [vmem:[#allocation7 + $0x10] sm:$0xff] %v151
    %182 = vst [vmem:[#allocation7 + $0x18] sm:$0xff] %v156
    %183 = vst [vmem:[#allocation7 + $0x20] sm:$0xff] %v161
    %184 = vst [vmem:[#allocation7 + $0x28] sm:$0xff] %v166
    %185 = vst [vmem:[#allocation7 + $0x30] sm:$0xff] %v171
    %186 = vst [vmem:[#allocation7 + $0x38] sm:$0xff] %v176
    // Predicated region
    $region22: #{tpu_custom_call.1} parent=1 // pred_check
      _
    $region23: #{tpu_custom_call.1} parent=1 // pred_check_branch
      %188 = sbr.rel (0) target = $region25
    $region24: #{tpu_custom_call.1} parent=1 // pred_region
      %s190 = ssub.s32 1024, 1024
      %191 = vsyncadd [#allocation4], %s190
      %s192 = sshll.u32 [#allocation7], 4
      %s193 = int_to_ptr.vmem [resolvable:$true] %s192
      %198 = dma.vmem_to_hbm [thread:$0]  %s193, 1024, %s3, [#allocation4], 128, 128, 8
    $region25: #{tpu_custom_call.1} parent=1 // pred_fallthru
      _
    // Predicated region
    $region26: #{tpu_custom_call.1} parent=1 // pred_check
      _
    $region27: #{tpu_custom_call.1} parent=1 // pred_check_branch
      %200 = sbr.rel (0) target = $region29
    $region28: #{tpu_custom_call.1} parent=1 // pred_region
      %201 = dma.done [#allocation4], 1024
    $region29: #{tpu_custom_call.1} parent=1 // pred_fallthru
      _
    %202 = vsyncpa [#allocation3], 1
    %203 = vsyncpa [#allocation6], 1
    %204 = vsyncpa [#allocation4], 1

</llo_original>
